<compile_context>
chip_gen: v7x
topology: tpu7x:2x2x1
jax: 0.10.0
libtpu: 0.0.40
codegen_flags: <defaults>
</compile_context>

<pallas_src>
import functools

import numpy as np
import jax
import jax.numpy as jnp
from jax.experimental import pallas as pl
from jax.experimental.pallas import tpu as pltpu


# ----------------------------------------------------------------------------
# Kernel: embedding gather as a one-hot x table matmul on the MXU.
# ----------------------------------------------------------------------------
def _label_embed_kernel(lab_ref, table_ref, o_ref):
    lab = lab_ref[...]                                       # (bb, 1) int32, final labels
    bb = lab_ref.shape[0]
    V = table_ref.shape[0]
    # one-hot(labels) via lane broadcast + compare (VPU); gather via MXU.
    iota = jax.lax.broadcasted_iota(jnp.int32, (bb, V), 1)
    onehot = (lab == iota).astype(table_ref.dtype)           # native dtype (bf16-fast)
    emb = jnp.dot(onehot, table_ref[...], preferred_element_type=jnp.float32)
    o_ref[...] = emb.astype(o_ref.dtype)                     # lane-dense (bb, D) store


# ----------------------------------------------------------------------------
# Wrapper: LabelEmbedder.forward(labels, train, force_drop_ids)
# ----------------------------------------------------------------------------
def label_embedder_forward(labels, embedding_table, *, num_classes,
                           dropout_prob=0.0, train=False, force_drop_ids=None,
                           rng=None, block_b=1024, out_dtype=None):
    """labels: (B,) int, embedding_table: (num_classes [+1], D) -> (B, D)."""
    B = labels.shape[0]
    V, D = embedding_table.shape
    out_dtype = embedding_table.dtype if out_dtype is None else jnp.dtype(out_dtype)

    # ---- token_drop (done in the wrapper so the kernel has one label stream) ----
    use_dropout = dropout_prob > 0
    dropping_possible = (train and use_dropout) or (force_drop_ids is not None)
    labels = labels.astype(jnp.int32)
    if dropping_possible:
        if V != num_classes + 1:
            raise ValueError(
                "token_drop requires the CFG null row: table must have "
                f"num_classes + 1 = {num_classes + 1} rows, got {V}.")
        if force_drop_ids is None:
            if rng is None:
                raise ValueError("rng key required for train-time label dropout.")
            # TODO(synk): matches torch.rand(...) < p semantics, but uses the JAX
            # PRNG stream (bit-wise identity with torch RNG is impossible).
            drop = jax.random.uniform(rng, (B,)) < dropout_prob
        else:
            drop = force_drop_ids == 1
        labels = jnp.where(drop, jnp.int32(num_classes), labels)

    # ---- batch tiling ----
    # >= 2 blocks whenever B >= 16 so v7x's second TensorCore gets work; big
    # blocks (block_b) for large batches to amortize per-step overhead.
    if B >= 2 * block_b:
        bb = block_b
    elif B >= 16:
        bb = 8 * pl.cdiv(pl.cdiv(B, 2), 8)
    else:
        bb = 8 * pl.cdiv(B, 8)                         # tiny batch: single padded block
    n_blocks = pl.cdiv(B, bb)
    B_pad = bb * n_blocks
    pad = B_pad - B
    # Pad rows get label 0 -> they compute class-0 embeddings and are sliced off.
    lab_p = jnp.pad(labels, (0, pad)).reshape(B_pad, 1)

    # TODO(synk): for very large V (table or bb*V one-hot exceeding a few MiB,
    # which bites v7x's 64 MiB VMEM first) switch to a scalar-prefetch DMA
    # row-gather instead of the one-hot matmul.

    # ---- VMEM budget: table (x1) + output (x2) + one-hot temp + f32 acc ----
    tab_bytes = V * D * embedding_table.dtype.itemsize
    vmem_est = (tab_bytes
                + 2 * bb * D * out_dtype.itemsize
                + bb * V * embedding_table.dtype.itemsize
                + bb * D * 4
                + 2 * bb * 4)
    vmem_limit = int(max(32 * 1024 * 1024, min(2 * vmem_est, 96 * 1024 * 1024)))

    out = pl.pallas_call(
        _label_embed_kernel,
        out_shape=jax.ShapeDtypeStruct((B_pad, D), out_dtype),
        grid=(n_blocks,),
        in_specs=[
            pl.BlockSpec((bb, 1), lambda i: (i, 0)),              # final labels
            pl.BlockSpec((V, D), lambda i: (0, 0),                # table: VMEM-resident,
                         pipeline_mode=pl.Buffered(1)),           # single-buffered
        ],
        out_specs=pl.BlockSpec((bb, D), lambda i: (i, 0)),        # lane-dense output
        compiler_params=pltpu.CompilerParams(
            dimension_semantics=("parallel",),                    # megacore on v7x
            vmem_limit_bytes=vmem_limit),
    )(lab_p, embedding_table)
    return out[:B]


# ----------------------------------------------------------------------------
if __name__ == "__main__":
    num_classes = 10
    hidden_size = 256            # lane-dense (multiple of 128)
    dropout_prob = 0.1           # > 0  ->  table has the extra CFG null row
    batch = 2

    key = jax.random.PRNGKey(0)
    k_tab, k_lab = jax.random.split(key, 2)
    V = num_classes + (1 if dropout_prob > 0 else 0)
    table = jax.random.normal(k_tab, (V, hidden_size), jnp.float32) * 0.02
    labels = jax.random.randint(k_lab, (batch,), 0, num_classes)

    # ---- eval forward (train=False, no forced drops): plain embedding lookup ----
    fwd = jax.jit(functools.partial(
        label_embedder_forward, num_classes=num_classes,
        dropout_prob=dropout_prob, train=False))
    emb = jax.block_until_ready(fwd(labels, table))
    assert emb.shape == (batch, hidden_size)
    ref = table[labels]
    np.testing.assert_allclose(np.asarray(emb), np.asarray(ref), rtol=1e-6, atol=1e-6)

    # ---- classifier-free-guidance path: force-drop the first label ----
    force = jnp.array([1, 0], jnp.int32)
    emb_cfg = jax.block_until_ready(label_embedder_forward(
        labels, table, num_classes=num_classes, dropout_prob=dropout_prob,
        train=False, force_drop_ids=force))
    ref_cfg = table[jnp.where(force == 1, num_classes, labels)]
    np.testing.assert_allclose(np.asarray(emb_cfg), np.asarray(ref_cfg),
                               rtol=1e-6, atol=1e-6)

    # ---- bf16 table path: native-dtype MXU gather, exact row reproduction ----
    table_bf16 = table.astype(jnp.bfloat16)
    emb_bf16 = jax.block_until_ready(label_embedder_forward(
        labels, table_bf16, num_classes=num_classes,
        dropout_prob=dropout_prob, train=False))
    ref_bf16 = table_bf16[labels]
    np.testing.assert_array_equal(np.asarray(emb_bf16), np.asarray(ref_bf16))

    assert bool(jnp.all(jnp.isfinite(emb))) and bool(jnp.all(jnp.isfinite(emb_cfg)))
    print("KERNEL_OK")
</pallas_src>

<mosaic_0001>
module attributes {stable_mosaic.version = 11 : i64} {
  func.func @_label_embed_kernel(%arg0: i32, %arg1: memref<8x1xi32, #tpu.memory_space<vmem>>, %arg2: memref<11x256xf32, #tpu.memory_space<vmem>>, %arg3: memref<8x256xf32, #tpu.memory_space<vmem>>) attributes {dimension_semantics = [#tpu.dimension_semantics<parallel>], iteration_bounds = array<i64: 1>, scalar_prefetch = 0 : i64, scratch_operands = 0 : i64, tpu.core_type = #tpu.core_type<tc>, window_params = [{transform_indices = @transform_0, window_bounds = array<i64: 8, 1>}, {pipeline_mode = #tpu.pipeline_mode<synchronous>, transform_indices = @transform_1, window_bounds = array<i64: 11, 256>}, {transform_indices = @transform_2, window_bounds = array<i64: 8, 256>}]} {
    %c0 = arith.constant 0 : index
    %c0_0 = arith.constant 0 : index
    %0 = vector.load %arg1[%c0, %c0_0] : memref<8x1xi32, #tpu.memory_space<vmem>>, vector<8x1xi32>
    %1 = tpu.iota {dimensions = array<i32: 1>} : vector<8x11xi32>
    %2 = vector.broadcast %0 : vector<8x1xi32> to vector<8x11xi32>
    %3 = arith.cmpi eq, %2, %1 : vector<8x11xi32>
    %4 = arith.extui %3 : vector<8x11xi1> to vector<8x11xi32>
    %5 = arith.sitofp %4 : vector<8x11xi32> to vector<8x11xf32>
    %c0_1 = arith.constant 0 : index
    %c0_2 = arith.constant 0 : index
    %6 = vector.load %arg2[%c0_1, %c0_2] : memref<11x256xf32, #tpu.memory_space<vmem>>, vector<11x256xf32>
    %cst = arith.constant dense<0.000000e+00> : vector<8x256xf32>
    %7 = tpu.matmul %5, %6, %cst {dimension_numbers = #tpu.dot_dimension_numbers<[1], [0], [0], [1], [0, 0, 1, 1], [], []>} : vector<8x11xf32>, vector<11x256xf32>, vector<8x256xf32> -> vector<8x256xf32>
    %c0_3 = arith.constant 0 : index
    %c0_4 = arith.constant 0 : index
    %8 = vector.load %arg3[%c0_3, %c0_4] : memref<8x256xf32, #tpu.memory_space<vmem>>, vector<8x256xf32>
    tpu.vector_store %arg3[%c0_3, %c0_4], %7 {strides = array<i32>} : memref<8x256xf32, #tpu.memory_space<vmem>>, vector<8x256xf32>,
    return
  }
  func.func @transform_0(%arg0: i32) -> (i32, i32) {
    %c0_i32 = arith.constant 0 : i32
    %c0_i32_0 = arith.constant 0 : i32
    return %arg0, %c0_i32 : i32, i32
  }
  func.func @transform_1(%arg0: i32) -> (i32, i32) {
    %c0_i32 = arith.constant 0 : i32
    %c0_i32_0 = arith.constant 0 : i32
    %c0_i32_1 = arith.constant 0 : i32
    return %c0_i32, %c0_i32_0 : i32, i32
  }
  func.func @transform_2(%arg0: i32) -> (i32, i32) {
    %c0_i32 = arith.constant 0 : i32
    %c0_i32_0 = arith.constant 0 : i32
    return %arg0, %c0_i32 : i32, i32
  }
}

</mosaic_0001>

<llo_original>
// kernel: label_embedder_forward.1
$region0: #{label_embedder_forward.1}
  #allocation0 [shape = 'u32[]', space=smem, size = 0x4, offset = 0x4, fixed_abs, tag = 'smem constant byte address 0x4 - core index']
  #allocation1 [shape = 'u32[144,128]{1,0:T(1,128)}', space=vmem, size = 0x12000, scoped, tag = 'internal scratch']
  %s0 = inlined_call_operand.vmem [shape: s32[8,1], index: 0, kind: input, shape index: {}]
  %s1 = inlined_call_operand.hbm [shape: f32[11,256], index: 1, kind: input, shape index: {}]
  %s2 = inlined_call_operand.vmem [shape: f32[8,256], index: 2, kind: output, shape index: {}]
  %s3 = sld [smem:[#allocation0]]
  $region22: #{label_embedder_forward.1} parent=0
    _
  %s5 = ssub.s32 1, %s3
  %s6 = scalar_select 0, %s5, %s3
  $region1: #{label_embedder_forward.1} parent=0
    #allocation2 [shape = 'u8[16384]{0}', space=vmem, size = 0x4000, scoped, tag = 'input window, operand 1, single buffered']
    #allocation3 [shape = 's32[1]{0}', space=sflag, size = 0x4, scoped, tag = 'scoped memory for label_embedder_forward.1']
    %7 = vsyncpa [#allocation3], 0
    // Predicated region
    $region2: #{label_embedder_forward.1} parent=1 // pred_check
      _
    $region3: #{label_embedder_forward.1} parent=1 // pred_check_branch
      %9 = sbr.rel (0) target = $region5
    $region4: #{label_embedder_forward.1} parent=1 // pred_region
      _
    $region5: #{label_embedder_forward.1} parent=1 // pred_fallthru
      _
    // Predicated region
    $region6: #{label_embedder_forward.1} parent=1 // pred_check
      _
    $region7: #{label_embedder_forward.1} parent=1 // pred_check_branch
      %11 = sbr.rel (0) target = $region9
    $region8: #{label_embedder_forward.1} parent=1 // pred_region
      %s13 = ssub.s32 512, 512
      %14 = vsyncadd [#allocation3], %s13
      %s15 = sshll.u32 [#allocation2], 4
      %s16 = int_to_ptr.vmem [resolvable:$true] %s15
      %21 = dma.hbm_to_vmem [thread:$0]  %s1, 512, %s16, [#allocation3], 256, 256, 16
    $region9: #{label_embedder_forward.1} parent=1 // pred_fallthru
      _
    // Predicated region
    $region10: #{label_embedder_forward.1} parent=1 // pred_check
      _
    $region11: #{label_embedder_forward.1} parent=1 // pred_check_branch
      %23 = sbr.rel (0) target = $region13
    $region12: #{label_embedder_forward.1} parent=1 // pred_region
      %24 = dma.done [#allocation3], 512
    $region13: #{label_embedder_forward.1} parent=1 // pred_fallthru
      _
    %v25 = vld [vmem:[%s0] sm:$0xff]
    %v26 = vlaneseq
    %v27 = vand.u32 %v26, 127
    %28 = vset.pattern.permute.xlu0 0
    %29 = vperm.xlu0 %28, %v25
    %v30 = vpop.permute.xlu0 %29
    %vm31 = vcmp.eq.s32.totalorder %v30, %v27
    %v32 = vsel %vm31, 1, 0
    %v33 = vcvt.s32.f32 %v32
    %v34 = vld [vmem:[#allocation2] sm:$0xff]
    %v35 = vld [vmem:[#allocation2 + $0x8] sm:$0xff]
    %v36 = vld [vmem:[#allocation2 + $0x10] sm:$0x7]
    %v37 = vld [vmem:[#allocation2 + $0x18] sm:$0x7]
    %vm38 = vcmask 89088
    %v40 = vsel %vm38, %v33, 0
    %vm42 = vcmask 1042432
    %v44 = vsel %vm42, %v36, 0
    %v47 = vsel %vm42, %v37, 0
    %49 = vmatprep.subr.mxu0 %v35
    %50 = vmatpush1.msra.mxu0 %v34
    %51 = vmatprep.subr.mxu0 %v47
    %52 = vmatpush1.msra.mxu0 %v44
    %53 = vmatprep.subr.mxu0 0.0
    %54 = vmatpush1.msra.mxu0 0.0
    %55 = vmatprep.subr.mxu0 0.0
    %56 = vmatpush1.msra.mxu0 0.0
    %57 = vmatprep.subr.mxu0 0.0
    %58 = vmatpush1.msra.mxu0 0.0
    %59 = vmatprep.subr.mxu0 0.0
    %60 = vmatpush1.msra.mxu0 0.0
    %61 = vmatprep.subr.mxu0 0.0
    %62 = vmatpush1.msra.mxu0 0.0
    %63 = vmatprep.subr.mxu0 0.0
    %64 = vmatpush1.msra.mxu0 0.0
    %65 = vmatprep.subr.mxu0 0.0
    %66 = vmatpush1.msra.mxu0 0.0
    %67 = vmatprep.subr.mxu0 0.0
    %68 = vmatpush1.msra.mxu0 0.0
    %69 = vmatprep.subr.mxu0 0.0
    %70 = vmatpush1.msra.mxu0 0.0
    %71 = vmatprep.subr.mxu0 0.0
    %72 = vmatpush1.msra.mxu0 0.0
    %73 = vmatprep.subr.mxu0 0.0
    %74 = vmatpush1.msra.mxu0 0.0
    %75 = vmatprep.subr.mxu0 0.0
    %76 = vmatpush1.msra.mxu0 0.0
    %77 = vmatprep.subr.mxu0 0.0
    %78 = vmatpush1.msra.mxu0 0.0
    %79 = vmatprep.subr.mxu0 0.0
    %80 = vmatpush1.msra.mxu0 0.0
    %81 = vmatprep.subr.mxu0 0.0
    %82 = vmatpush1.msra.mxu0 0.0
    %83 = vmatprep.subr.mxu0 0.0
    %84 = vmatpush1.msra.mxu0 0.0
    %85 = vmatprep.subr.mxu0 0.0
    %86 = vmatpush1.msra.mxu0 0.0
    %87 = vmatprep.subr.mxu0 0.0
    %88 = vmatpush1.msra.mxu0 0.0
    %89 = vmatprep.subr.mxu0 0.0
    %90 = vmatpush1.msra.mxu0 0.0
    %91 = vmatprep.subr.mxu0 0.0
    %92 = vmatpush1.msra.mxu0 0.0
    %93 = vmatprep.subr.mxu0 0.0
    %94 = vmatpush1.msra.mxu0 0.0
    %95 = vmatprep.subr.mxu0 0.0
    %96 = vmatpush1.msra.mxu0 0.0
    %97 = vmatprep.subr.mxu0 0.0
    %98 = vmatpush1.msra.mxu0 0.0
    %99 = vmatprep.subr.mxu0 0.0
    %100 = vmatpush1.msra.mxu0 0.0
    %101 = vmatprep.subr.mxu0 0.0
    %102 = vmatpush1.msra.mxu0 0.0
    %103 = vmatprep.subr.mxu0 0.0
    %104 = vmatpush1.msra.mxu0 0.0
    %105 = vmatprep.subr.mxu0 0.0
    %106 = vmatpush1.msra.mxu0 0.0
    %107 = vmatprep.subr.mxu0 0.0
    %108 = vmatpush1.msra.mxu0 0.0
    %109 = vmatprep.subr.mxu0 0.0
    %110 = vmatpush1.msra.mxu0 0.0
    %111 = vmatprep.subr.mxu0 0.0
    %112 = vmatpush1.msra.mxu0 0.0
    %113 = vmatprep.mubr.f32.mxu0 0.0
    %114 = vmatmul.mubr.f32.gmra.mrb[0].mxu0 %v40
    %v115 = vpop.f32.mrb[0].mxu0
    %v116 = vadd.f32 0.0, %v115
    %v117 = vpop.f32.mrb[0].mxu0
    %v118 = vadd.f32 0.0, %v117
    %119 = vdwg.mxu0
    %120 = vst [vmem:[%s2] sm:$0xff] %v116
    %121 = vst [vmem:[%s2 + $0x8] sm:$0xff] %v118
    // Predicated region
    $region14: #{label_embedder_forward.1} parent=1 // pred_check
      _
    $region15: #{label_embedder_forward.1} parent=1 // pred_check_branch
      %123 = sbr.rel (0) target = $region17
    $region16: #{label_embedder_forward.1} parent=1 // pred_region
      _
    $region17: #{label_embedder_forward.1} parent=1 // pred_fallthru
      _
    // Predicated region
    $region18: #{label_embedder_forward.1} parent=1 // pred_check
      _
    $region19: #{label_embedder_forward.1} parent=1 // pred_check_branch
      %125 = sbr.rel (0) target = $region21
    $region20: #{label_embedder_forward.1} parent=1 // pred_region
      _
    $region21: #{label_embedder_forward.1} parent=1 // pred_fallthru
      _
    %126 = vsyncpa [#allocation3], 1

</llo_original>
